<compile_context>
chip_gen: v6e
topology: v6e:2x2x1
jax: 0.10.0
libtpu: 0.0.40
codegen_flags: <defaults>
</compile_context>

<pallas_src>
import jax
import jax.numpy as jnp
from jax.experimental import pallas as pl
from jax.experimental.pallas import tpu as pltpu


def context_gating_kernel(x_ref, w_ref, b_ref, o_ref):
    # x_ref/o_ref: (C, hw_tile) -- channels on sublanes, spatial on lanes
    # w_ref: (C, C) PyTorch (out, in) layout, so lin = W @ x
    # b_ref: (C, 1)  f32 bias, broadcast over lanes
    x = x_ref[...]
    # C is tiny (e.g. 8) so the MXU tile is mostly padding, but the kernel is
    # memory-bound and the MXU/extended slot is otherwise idle on v6e/v7x.
    # TODO(synk): on v5e, if a bundle dump shows the padded vmatmul binding,
    # replace this with a VPU channel-mix (stride-0 sublane broadcast + mul/add).
    lin = jnp.dot(w_ref[...], x, preferred_element_type=jnp.float32)
    lin = lin + b_ref[...]                                  # (C, hw_tile) f32
    # sigmoid(z) = 1 / (1 + exp(-z)); exp + approx reciprocal both run on EUP.
    # NOTE: garbage lanes of a tail block can produce inf/NaN here; stores are
    # masked, so the visible result is still correct.
    gate = pl.reciprocal(1.0 + jnp.exp(-lin), approx=True)
    # Multiply in the activation dtype (cast the gate down, not x up): removes
    # two per-vreg casts; on v5e the compiler upcasts bf16 on the VPU anyway.
    o_ref[...] = (x * gate.astype(x.dtype)).astype(o_ref.dtype)


def _pick_hw_tile(hw, c, itemsize, target_vmem_block_bytes=4 << 20):
    """Lane-dense spatial tile: multiple of 128 lanes, ~4 MiB VMEM per block.

    VMEM footprint counts the channel dim padded to the dtype's sublane tile
    (f32: 8, bf16: 16, int8/fp8: 32 rows), so bf16 with C=8 doesn't overshoot.
    """
    if hw <= 128:
        return hw                              # full extent (exempt from 128 rule)
    sublane = 8 * max(1, 4 // itemsize)        # rows per vreg tile for this dtype
    padded_c = -(-c // sublane) * sublane
    lanes = (target_vmem_block_bytes // (padded_c * itemsize)) // 128 * 128
    lanes = max(128, lanes)
    if hw <= lanes:
        return hw                              # whole spatial extent in one block
    return lanes


def context_gating(x_nchw, weight, bias, *, io_dtype=None):
    """ContextGating forward.

    x_nchw: (N, C, H, W); weight: (C, C) PyTorch (out, in); bias: (C,).
    io_dtype: dtype used for x / weight / output HBM traffic.  Pass
      jnp.bfloat16 on v6e/v7x to halve bandwidth (the dominant cost); the
      matmul always accumulates in f32.  Defaults to x's dtype.
    """
    N, C, H, W = x_nchw.shape
    HW = H * W
    if io_dtype is None:
        io_dtype = x_nchw.dtype
    x_rows = x_nchw.reshape(N, C, HW).astype(io_dtype)  # contiguous, no transpose
    w = weight.astype(io_dtype)                         # cast once, not per block
    b_col = bias.reshape(C, 1).astype(jnp.float32)

    hw_tile = _pick_hw_tile(HW, C, jnp.dtype(io_dtype).itemsize)
    grid = (pl.cdiv(HW, hw_tile), N)                    # long spatial axis leading

    out = pl.pallas_call(
        context_gating_kernel,
        out_shape=jax.ShapeDtypeStruct((N, C, HW), io_dtype),
        grid_spec=pltpu.PrefetchScalarGridSpec(
            num_scalar_prefetch=0,
            grid=grid,
            in_specs=[
                # x tile: batch dim squeezed out of the kernel view.
                pl.BlockSpec((pl.Squeezed(), C, hw_tile), lambda t, n: (n, 0, t)),
                pl.BlockSpec((C, C), lambda t, n: (0, 0)),   # weight (resident)
                pl.BlockSpec((C, 1), lambda t, n: (0, 0)),   # bias (resident)
            ],
            out_specs=pl.BlockSpec((pl.Squeezed(), C, hw_tile),
                                   lambda t, n: (n, 0, t)),
        ),
        compiler_params=pltpu.CompilerParams(
            # Both axes independent; leading long hw_tiles axis gives v7x's two
            # TensorCores a near-even split even when N == 1.
            dimension_semantics=("parallel", "parallel"),
            # Above the default scoped limits (v5e 16 / v6e 32 MiB) while
            # staying inside v7x's 64 MiB physical VMEM.
            vmem_limit_bytes=48 * 1024 * 1024,
        ),
    )(x_rows, w, b_col)

    return out.reshape(N, C, H, W)


def context_gating_ref(x_nchw, weight, bias):
    x_nhwc = jnp.transpose(x_nchw, (0, 2, 3, 1))
    lin = x_nhwc @ weight.T + bias
    lin = jnp.transpose(lin, (0, 3, 1, 2))
    return x_nchw * jax.nn.sigmoid(lin)


if __name__ == "__main__":
    key = jax.random.PRNGKey(0)
    kx, kw, kb = jax.random.split(key, 3)

    N, C, H, W = 2, 8, 16, 16   # in_dim = C = 8
    x = jax.random.normal(kx, (N, C, H, W), dtype=jnp.float32)

    # Deterministic "Linear(in_dim, in_dim)" parameters (PyTorch uniform init bound).
    bound = 1.0 / jnp.sqrt(jnp.float32(C))
    weight = jax.random.uniform(kw, (C, C), minval=-bound, maxval=bound,
                                dtype=jnp.float32)
    bias = jax.random.uniform(kb, (C,), minval=-bound, maxval=bound,
                              dtype=jnp.float32)

    ref = context_gating_ref(x, weight, bias)

    # f32 path (matches the PyTorch module's dtype exactly).
    out = jax.block_until_ready(context_gating(x, weight, bias))
    assert out.shape == (N, C, H, W)
    assert out.dtype == x.dtype
    # Tolerance accounts for the EUP approximate reciprocal in the sigmoid.
    assert jnp.allclose(out, ref, atol=5e-3, rtol=5e-3)

    # bf16 I/O path (the bandwidth fast path on v6e/v7x); f32 accumulation inside.
    out_bf16 = jax.block_until_ready(
        context_gating(x, weight, bias, io_dtype=jnp.bfloat16))
    assert out_bf16.dtype == jnp.bfloat16
    assert jnp.allclose(out_bf16.astype(jnp.float32), ref, atol=5e-2, rtol=5e-2)

    print("KERNEL_OK")
</pallas_src>

<mosaic_0001>
module attributes {stable_mosaic.version = 11 : i64} {
  func.func @context_gating_kernel(%arg0: i32, %arg1: i32, %arg2: memref<1x8x256xf32, #tpu.memory_space<vmem>>, %arg3: memref<8x8xf32, #tpu.memory_space<vmem>>, %arg4: memref<8x1xf32, #tpu.memory_space<vmem>>, %arg5: memref<1x8x256xf32, #tpu.memory_space<vmem>>) attributes {dimension_semantics = [#tpu.dimension_semantics<parallel>, #tpu.dimension_semantics<parallel>], iteration_bounds = array<i64: 1, 2>, scalar_prefetch = 0 : i64, scratch_operands = 0 : i64, tpu.core_type = #tpu.core_type<tc>, window_params = [{transform_indices = @transform_0, window_bounds = array<i64: 1, 8, 256>}, {pipeline_mode = #tpu.pipeline_mode<synchronous>, transform_indices = @transform_1, window_bounds = array<i64: 8, 8>}, {pipeline_mode = #tpu.pipeline_mode<synchronous>, transform_indices = @transform_2, window_bounds = array<i64: 8, 1>}, {transform_indices = @transform_3, window_bounds = array<i64: 1, 8, 256>}]} {
    %c0 = arith.constant 0 : index
    %c0_0 = arith.constant 0 : index
    %c0_1 = arith.constant 0 : index
    %0 = vector.load %arg2[%c0, %c0_0, %c0_1] : memref<1x8x256xf32, #tpu.memory_space<vmem>>, vector<1x8x256xf32>
    %1 = vector.shape_cast %0 : vector<1x8x256xf32> to vector<8x256xf32>
    %c0_2 = arith.constant 0 : index
    %c0_3 = arith.constant 0 : index
    %2 = vector.load %arg3[%c0_2, %c0_3] : memref<8x8xf32, #tpu.memory_space<vmem>>, vector<8x8xf32>
    %cst = arith.constant dense<0.000000e+00> : vector<8x256xf32>
    %3 = tpu.matmul %2, %1, %cst {dimension_numbers = #tpu.dot_dimension_numbers<[1], [0], [0], [1], [0, 0, 1, 1], [], []>} : vector<8x8xf32>, vector<8x256xf32>, vector<8x256xf32> -> vector<8x256xf32>
    %c0_4 = arith.constant 0 : index
    %c0_5 = arith.constant 0 : index
    %4 = vector.load %arg4[%c0_4, %c0_5] : memref<8x1xf32, #tpu.memory_space<vmem>>, vector<8x1xf32>
    %5 = vector.broadcast %4 : vector<8x1xf32> to vector<8x256xf32>
    %6 = arith.addf %3, %5 : vector<8x256xf32>
    %cst_6 = arith.constant 0.000000e+00 : f32
    %7 = vector.broadcast %cst_6 : f32 to vector<8x256xf32>
    %8 = arith.subf %7, %6 : vector<8x256xf32>
    %9 = math.exp %8 : vector<8x256xf32>
    %cst_7 = arith.constant 1.000000e+00 : f32
    %10 = vector.broadcast %cst_7 : f32 to vector<8x256xf32>
    %11 = arith.addf %10, %9 : vector<8x256xf32>
    %12 = tpu.reciprocal %11 {approx = true} : vector<8x256xf32> -> vector<8x256xf32>
    %13 = arith.mulf %1, %12 : vector<8x256xf32>
    %c0_8 = arith.constant 0 : index
    %c0_9 = arith.constant 0 : index
    %c0_10 = arith.constant 0 : index
    %14 = vector.load %arg5[%c0_8, %c0_9, %c0_10] : memref<1x8x256xf32, #tpu.memory_space<vmem>>, vector<1x8x256xf32>
    %15 = vector.shape_cast %14 : vector<1x8x256xf32> to vector<8x256xf32>
    %16 = vector.shape_cast %13 : vector<8x256xf32> to vector<1x8x256xf32>
    tpu.vector_store %arg5[%c0_8, %c0_9, %c0_10], %16 {strides = array<i32>} : memref<1x8x256xf32, #tpu.memory_space<vmem>>, vector<1x8x256xf32>,
    return
  }
  func.func @transform_0(%arg0: i32, %arg1: i32) -> (i32, i32, i32) {
    %c0_i32 = arith.constant 0 : i32
    %c0_i32_0 = arith.constant 0 : i32
    return %arg1, %c0_i32, %arg0 : i32, i32, i32
  }
  func.func @transform_1(%arg0: i32, %arg1: i32) -> (i32, i32) {
    %c0_i32 = arith.constant 0 : i32
    %c0_i32_0 = arith.constant 0 : i32
    %c0_i32_1 = arith.constant 0 : i32
    return %c0_i32, %c0_i32_0 : i32, i32
  }
  func.func @transform_2(%arg0: i32, %arg1: i32) -> (i32, i32) {
    %c0_i32 = arith.constant 0 : i32
    %c0_i32_0 = arith.constant 0 : i32
    %c0_i32_1 = arith.constant 0 : i32
    return %c0_i32, %c0_i32_0 : i32, i32
  }
  func.func @transform_3(%arg0: i32, %arg1: i32) -> (i32, i32, i32) {
    %c0_i32 = arith.constant 0 : i32
    %c0_i32_0 = arith.constant 0 : i32
    return %arg1, %c0_i32, %arg0 : i32, i32, i32
  }
}

</mosaic_0001>

<llo_original>
// kernel: tpu_custom_call.1
$region0: #{tpu_custom_call.1}
  #allocation0 [shape = 'u32[]', space=smem, size = 0x4, offset = 0x4, fixed_abs, tag = 'smem constant byte address 0x4 - core index']
  #allocation1 [shape = 'u32[144,128]{1,0:T(1,128)}', space=vmem, size = 0x12000, scoped, tag = 'internal scratch']
  %s0 = inlined_call_operand.hbm [shape: f32[2,8,256], index: 0, kind: input, shape index: {}]
  %s1 = inlined_call_operand.vmem [shape: f32[8,8], index: 1, kind: input, shape index: {}]
  %s2 = inlined_call_operand.vmem [shape: f32[8,1], index: 2, kind: input, shape index: {}]
  %s3 = inlined_call_operand.hbm [shape: f32[2,8,256], index: 3, kind: output, shape index: {}]
  %s4 = sld [smem:[#allocation0]]
  $region49: #{tpu_custom_call.1} parent=0
    _
  %s6 = ssub.s32 1, %s4
  %s7 = scalar_select 0, %s6, %s4
  $region1: #{tpu_custom_call.1} parent=0
    #allocation2 [shape = 'u8[16384]{0}', space=vmem, size = 0x4000, scoped, tag = 'input window, operand 0']
    #allocation3 [shape = 's32[2]{0}', space=sflag, size = 0x8, scoped, tag = 'scoped memory for tpu_custom_call.1']
    #allocation4 [shape = 's32[2]{0}', space=sflag, size = 0x8, scoped, tag = 'scoped memory for tpu_custom_call.1']
    #allocation5 [shape = 'u8[16384]{0}', space=vmem, size = 0x4000, scoped, tag = 'output window, operand 0']
    %8 = vsyncpa [#allocation3], 0
    %s9 = scalar_lea.sflag [#allocation3], 1
    %10 = vsyncpa %s9, 0
    %11 = vsyncpa [#allocation4], 0
    %s12 = scalar_lea.sflag [#allocation4], 1
    %13 = vsyncpa %s12, 0
    loop: start=0, step=1, limit=4
    $region2: #{tpu_custom_call.1} parent=1 // loop_pre_header
      _
    $region3: #{tpu_custom_call.1} parent=1 // loop_header
      %s15 = sphi 0, %s19
      %p16 = scmp.ge.s32.totalorder %s15, 4
      %s22 = sphi 0, %s34
      %s23 = sphi 0, %s30
      %s24 = sphi 0, %s22
      %s25 = sphi 0, %s23
      %s26 = sphi 0, %s24
      %s27 = sphi 0, %s25
      %s39 = sphi 0, %s41
      %s42 = sphi 0, %s39
      %s43 = sphi 0, %s42
      %s59 = sphi 0, %s43
      %s63 = sphi 0, %s63
      %s65 = sphi 0, %s63
      %s66 = sphi 0, %s65
      %s80 = sphi 0, %s66
      %s84 = sphi 0, %s84
      %s86 = sphi 0, %s84
      %s87 = sphi 0, %s86
      %s101 = sphi 0, %s87
      %s109 = sphi 0, %s111
      %s112 = sphi 0, %s109
      %s113 = sphi 0, %s112
      %s129 = sphi 0, %s113
    $region4: #{tpu_custom_call.1} parent=1 // loop_header_branch
      %18 = sbr.rel (%p16) target = $region8
    $region5: #{tpu_custom_call.1} parent=1 // loop_body
      %s20 = ssub.s32 %s15, 1
      %s21 = ssub.s32 %s15, 2
      %s28 = sadd.s32 1, %s23
      %p29 = scmp.ge.s32.totalorder %s28, 2
      %s30 = scalar_select %p29, 0, %s28
      %s31 = sadd.s32 1, %s22
      %s32 = scalar_select %p29, %s31, %s22
      %p33 = scmp.ge.s32.totalorder %s32, 1
      %s34 = scalar_select %p33, 0, %s32
      %s35 = ssub.s32 %s23, %s30
      %s36 = ssub.s32 %s22, %s34
      %s37 = sor.u32 %s35, %s36
      %p38 = scmp.eq.s32.totalorder %s37, 0
      %s40 = sadd.s32 %s39, 1
      %s41 = scalar_select %p38, %s39, %s40
      %p44 = pneg %p38
      %p45 = scmp.eq.s32.totalorder %s15, 1
      %p46 = por %p44, %p45
      %p47 = scmp.ne.s32.totalorder %s39, %s42
      %p48 = scmp.eq.s32.totalorder %s15, 0
      %p49 = por %p47, %p48
      %p50 = scmp.ne.s32.totalorder %s39, %s42
      %p51 = scmp.eq.s32.totalorder %s20, 1
      %p52 = por %p50, %p51
      %p53 = scmp.ne.s32.totalorder %s42, %s43
      %p54 = scmp.eq.s32.totalorder %s20, 0
      %p55 = por %p53, %p54
      %p56 = scmp.ne.s32.totalorder %s42, %s43
      %p57 = scmp.eq.s32.totalorder %s21, 1
      %p58 = por %p56, %p57
      %p60 = scmp.ne.s32.totalorder %s43, %s59
      %p61 = scmp.eq.s32.totalorder %s21, 0
      %p62 = por %p60, %p61
      %s64 = sadd.s32 %s63, 1
      %p67 = scmp.eq.s32.totalorder %s15, 1
      %p68 = scmp.ne.s32.totalorder %s63, %s65
      %p69 = scmp.eq.s32.totalorder %s15, 0
      %p70 = por %p68, %p69
      %p71 = scmp.ne.s32.totalorder %s63, %s65
      %p72 = scmp.eq.s32.totalorder %s20, 1
      %p73 = por %p71, %p72
      %p74 = scmp.ne.s32.totalorder %s65, %s66
      %p75 = scmp.eq.s32.totalorder %s20, 0
      %p76 = por %p74, %p75
      %p77 = scmp.ne.s32.totalorder %s65, %s66
      %p78 = scmp.eq.s32.totalorder %s21, 1
      %p79 = por %p77, %p78
      %p81 = scmp.ne.s32.totalorder %s66, %s80
      %p82 = scmp.eq.s32.totalorder %s21, 0
      %p83 = por %p81, %p82
      %s85 = sadd.s32 %s84, 1
      %p88 = scmp.eq.s32.totalorder %s15, 1
      %p89 = scmp.ne.s32.totalorder %s84, %s86
      %p90 = scmp.eq.s32.totalorder %s15, 0
      %p91 = por %p89, %p90
      %p92 = scmp.ne.s32.totalorder %s84, %s86
      %p93 = scmp.eq.s32.totalorder %s20, 1
      %p94 = por %p92, %p93
      %p95 = scmp.ne.s32.totalorder %s86, %s87
      %p96 = scmp.eq.s32.totalorder %s20, 0
      %p97 = por %p95, %p96
      %p98 = scmp.ne.s32.totalorder %s86, %s87
      %p99 = scmp.eq.s32.totalorder %s21, 1
      %p100 = por %p98, %p99
      %p102 = scmp.ne.s32.totalorder %s87, %s101
      %p103 = scmp.eq.s32.totalorder %s21, 0
      %p104 = por %p102, %p103
      %s105 = ssub.s32 %s23, %s30
      %s106 = ssub.s32 %s22, %s34
      %s107 = sor.u32 %s105, %s106
      %p108 = scmp.eq.s32.totalorder %s107, 0
      %s110 = sadd.s32 %s109, 1
      %s111 = scalar_select %p108, %s109, %s110
      %p114 = pneg %p108
      %p115 = scmp.eq.s32.totalorder %s15, 1
      %p116 = por %p114, %p115
      %p117 = scmp.ne.s32.totalorder %s109, %s112
      %p118 = scmp.eq.s32.totalorder %s15, 0
      %p119 = por %p117, %p118
      %p120 = scmp.ne.s32.totalorder %s109, %s112
      %p121 = scmp.eq.s32.totalorder %s20, 1
      %p122 = por %p120, %p121
      %p123 = scmp.ne.s32.totalorder %s112, %s113
      %p124 = scmp.eq.s32.totalorder %s20, 0
      %p125 = por %p123, %p124
      %p126 = scmp.ne.s32.totalorder %s112, %s113
      %p127 = scmp.eq.s32.totalorder %s21, 1
      %p128 = por %p126, %p127
      %p130 = scmp.ne.s32.totalorder %s113, %s129
      %p131 = scmp.eq.s32.totalorder %s21, 0
      %p132 = por %p130, %p131
      %p133 = scmp.le.s32.totalorder 1, %s15
      %p134 = scmp.lt.s32.totalorder %s15, 3
      %p135 = pnand %p133, %p134
      %p136 = pneg %p135
      // Predicated region
      $region9: #{tpu_custom_call.1} parent=5 // pred_check
        _
      $region10: #{tpu_custom_call.1} parent=5 // pred_check_branch
        %138 = sbr.rel (%p135) target = $region12
      $region11: #{tpu_custom_call.1} parent=5 // pred_region
        %s139 = ssub.s32 %s15, 1
        // Predicated region
        $region13: #{tpu_custom_call.1} parent=11 // pred_check
          %p140 = pneg %p76
        $region14: #{tpu_custom_call.1} parent=11 // pred_check_branch
          %142 = sbr.rel (%p140) target = $region16
        $region15: #{tpu_custom_call.1} parent=11 // pred_region
          _
        $region16: #{tpu_custom_call.1} parent=11 // pred_fallthru
          _
        // Predicated region
        $region17: #{tpu_custom_call.1} parent=11 // pred_check
          %p143 = pneg %p97
        $region18: #{tpu_custom_call.1} parent=11 // pred_check_branch
          %145 = sbr.rel (%p143) target = $region20
        $region19: #{tpu_custom_call.1} parent=11 // pred_region
          _
        $region20: #{tpu_custom_call.1} parent=11 // pred_fallthru
          _
      $region12: #{tpu_custom_call.1} parent=5 // pred_fallthru
        _
      %p146 = scmp.lt.s32.totalorder %s15, 2
      // Predicated region
      $region21: #{tpu_custom_call.1} parent=5 // pred_check
        %p147 = pneg %p146
      $region22: #{tpu_custom_call.1} parent=5 // pred_check_branch
        %149 = sbr.rel (%p147) target = $region24
      $region23: #{tpu_custom_call.1} parent=5 // pred_region
        // Predicated region
        $region25: #{tpu_custom_call.1} parent=23 // pred_check
          %p150 = pneg %p49
        $region26: #{tpu_custom_call.1} parent=23 // pred_check_branch
          %152 = sbr.rel (%p150) target = $region28
        $region27: #{tpu_custom_call.1} parent=23 // pred_region
          %s153 = sand.u32 %s39, 1
          %s154 = scalar_lea.sflag [#allocation3], %s153
          %s155 = sand.u32 %s39, 1
          %s156 = smul.addr %s155, 16
          %s157 = scalar_lea.vmem [#allocation2], %s156
          %s158 = smul.u32 2, %s22
          %s160 = ssub.s32 256, 256
          %161 = vsyncadd %s154, %s160
          %s162 = smul.addr %s23, 2
          %s163 = sadd.s32 %s158, %s162
          %s164 = smul.addr %s163, 128
          %s165 = scalar_lea.hbm %s0, %s164
          %s167 = sshll.u32 %s157, 4
          %s168 = int_to_ptr.vmem [resolvable:$true] %s167
          %170 = dma.hbm_to_vmem [thread:$0]  %s165, 256, %s168, %s154
        $region28: #{tpu_custom_call.1} parent=23 // pred_fallthru
          _
      $region24: #{tpu_custom_call.1} parent=5 // pred_fallthru
        _
      %p171 = scmp.le.s32.totalorder 1, %s15
      %p172 = scmp.lt.s32.totalorder %s15, 3
      %p173 = pnand %p171, %p172
      %p174 = pneg %p173
      // Predicated region
      $region29: #{tpu_custom_call.1} parent=5 // pred_check
        _
      $region30: #{tpu_custom_call.1} parent=5 // pred_check_branch
        %176 = sbr.rel (%p173) target = $region32
      $region31: #{tpu_custom_call.1} parent=5 // pred_region
        %s177 = ssub.s32 %s15, 1
        %s178 = sand.u32 %s42, 1
        %s179 = scalar_lea.sflag [#allocation3], %s178
        %s180 = sand.u32 %s42, 1
        %s181 = smul.addr %s180, 16
        %s182 = scalar_lea.vmem [#allocation2], %s181
        // Predicated region
        $region33: #{tpu_custom_call.1} parent=31 // pred_check
          %p183 = pneg %p55
        $region34: #{tpu_custom_call.1} parent=31 // pred_check_branch
          %185 = sbr.rel (%p183) target = $region36
        $region35: #{tpu_custom_call.1} parent=31 // pred_region
          %186 = dma.done %s179, 256
        $region36: #{tpu_custom_call.1} parent=31 // pred_fallthru
          _
        %s187 = sand.u32 %s42, 1
        %s188 = scalar_lea.sflag [#allocation3], %s187
        %s189 = sand.u32 %s42, 1
        %s190 = smul.addr %s189, 16
        %s191 = scalar_lea.vmem [#allocation2], %s190
        %p192 = pneg %p55
        %p193 = pneg %p52
        %p194 = pneg %p76
        %p195 = pneg %p73
        %p196 = pneg %p97
        %p197 = pneg %p94
        %p198 = pneg %p125
        %p199 = pneg %p122
        %s200 = sand.u32 %s112, 1
        %s201 = scalar_lea.sflag [#allocation4], %s200
        %s202 = sand.u32 %s112, 1
        %s203 = smul.addr %s202, 16
        %s204 = scalar_lea.vmem [#allocation5], %s203
        %s205 = smul.u32 2, %s24
        %s206 = smul.u32 2, %s24
        %v207 = vld [vmem:[%s182] sm:$0xff]
        %v208 = vld [vmem:[%s182 + $0x8] sm:$0xff]
        %v209 = vld [vmem:[%s1] sm:$0xff]
        %v210 = vld [vmem:[%s2] sm:$0xff]
        %212 = vset.pattern.permute.xlu0 0
        %213 = vperm.xlu0 %212, %v210
        %v214 = vpop.permute.xlu0 %213
        %vm216 = vcmask 64512
        %v218 = vsel %vm216, %v209, 0
        %220 = vmatprep.subr.mxu0 0.0
        %221 = vmatpush1.msra.mxu0 0.0
        %222 = vmatprep.subr.mxu0 0.0
        %223 = vmatpush1.msra.mxu0 0.0
        %224 = vmatprep.subr.mxu0 0.0
        %225 = vmatpush1.msra.mxu0 0.0
        %226 = vmatprep.subr.mxu0 0.0
        %227 = vmatpush1.msra.mxu0 0.0
        %228 = vmatprep.subr.mxu0 0.0
        %229 = vmatpush1.msra.mxu0 0.0
        %230 = vmatprep.subr.mxu0 0.0
        %231 = vmatpush1.msra.mxu0 0.0
        %232 = vmatprep.subr.mxu0 0.0
        %233 = vmatpush1.msra.mxu0 0.0
        %234 = vmatprep.subr.mxu0 0.0
        %235 = vmatpush1.msra.mxu0 0.0
        %236 = vmatprep.subr.mxu0 0.0
        %237 = vmatpush1.msra.mxu0 0.0
        %238 = vmatprep.subr.mxu0 0.0
        %239 = vmatpush1.msra.mxu0 0.0
        %240 = vmatprep.subr.mxu0 0.0
        %241 = vmatpush1.msra.mxu0 0.0
        %242 = vmatprep.subr.mxu0 0.0
        %243 = vmatpush1.msra.mxu0 0.0
        %244 = vmatprep.subr.mxu0 0.0
        %245 = vmatpush1.msra.mxu0 0.0
        %246 = vmatprep.subr.mxu0 0.0
        %247 = vmatpush1.msra.mxu0 0.0
        %248 = vmatprep.subr.mxu0 0.0
        %249 = vmatpush1.msra.mxu0 0.0
        %250 = vmatprep.subr.mxu0 %v208
        %251 = vmatpush1.msra.mxu0 %v207
        %252 = vmatprep.subr.mxu0 0.0
        %253 = vmatpush2.msra.mxu0 0.0
        %254 = vmatprep.subr.mxu0 0.0
        %255 = vmatpush2.msra.mxu0 0.0
        %256 = vmatprep.subr.mxu0 0.0
        %257 = vmatpush2.msra.mxu0 0.0
        %258 = vmatprep.subr.mxu0 0.0
        %259 = vmatpush2.msra.mxu0 0.0
        %260 = vmatprep.subr.mxu0 0.0
        %261 = vmatpush2.msra.mxu0 0.0
        %262 = vmatprep.subr.mxu0 0.0
        %263 = vmatpush2.msra.mxu0 0.0
        %264 = vmatprep.subr.mxu0 0.0
        %265 = vmatpush2.msra.mxu0 0.0
        %266 = vmatprep.subr.mxu0 0.0
        %267 = vmatpush2.msra.mxu0 0.0
        %268 = vmatprep.subr.mxu0 0.0
        %269 = vmatpush2.msra.mxu0 0.0
        %270 = vmatprep.subr.mxu0 0.0
        %271 = vmatpush2.msra.mxu0 0.0
        %272 = vmatprep.subr.mxu0 0.0
        %273 = vmatpush2.msra.mxu0 0.0
        %274 = vmatprep.subr.mxu0 0.0
        %275 = vmatpush2.msra.mxu0 0.0
        %276 = vmatprep.subr.mxu0 0.0
        %277 = vmatpush2.msra.mxu0 0.0
        %278 = vmatprep.subr.mxu0 0.0
        %279 = vmatpush2.msra.mxu0 0.0
        %280 = vmatprep.subr.mxu0 0.0
        %281 = vmatpush2.msra.mxu0 0.0
        %282 = vmatprep.subr.mxu0 0.0
        %283 = vmatpush2.msra.mxu0 0.0
        %284 = vmatprep.mubr.f32.mxu0 0.0
        %285 = vmatmul.mubr.f32.gmra.mxu0 %v218
        %v286 = vpop.f32.mrf.mxu0
        %v287 = vadd.f32 %v214, %v286
        %v288 = vpop.f32.mrf.mxu0
        %v289 = vadd.f32 %v214, %v288
        %290 = vdwg.mxu0
        %v291 = vsub.f32 0.0, %v287
        %v292 = vsub.f32 0.0, %v289
        %v293 = vmul.f32 %v291, 1.442695
        %v294 = vpow.pop %v293
        %v295 = vmul.f32 %v292, 1.442695
        %v296 = vpow.pop %v295
        %v297 = vadd.f32 %v294, 1.0
        %v298 = vadd.f32 %v296, 1.0
        %v299 = vrcp.pop %v297
        %v300 = vrcp.pop %v298
        %v301 = vmul.f32 %v207, %v299
        %v302 = vmul.f32 %v208, %v300
        %303 = vst [vmem:[%s204] sm:$0xff] %v301
        %304 = vst [vmem:[%s204 + $0x8] sm:$0xff] %v302
        %s305 = sand.u32 %s112, 1
        %s306 = scalar_lea.sflag [#allocation4], %s305
        %s307 = sand.u32 %s112, 1
        %s308 = smul.addr %s307, 16
        %s309 = scalar_lea.vmem [#allocation5], %s308
        // Predicated region
        $region37: #{tpu_custom_call.1} parent=31 // pred_check
          %p310 = pneg %p122
        $region38: #{tpu_custom_call.1} parent=31 // pred_check_branch
          %312 = sbr.rel (%p310) target = $region40
        $region39: #{tpu_custom_call.1} parent=31 // pred_region
          %s313 = smul.u32 2, %s24
          %s315 = ssub.s32 256, 256
          %316 = vsyncadd %s306, %s315
          %s317 = smul.addr %s25, 2
          %s318 = sadd.s32 %s313, %s317
          %s319 = smul.addr %s318, 128
          %s320 = scalar_lea.hbm %s3, %s319
          %s322 = sshll.u32 %s309, 4
          %s323 = int_to_ptr.vmem [resolvable:$true] %s322
          %325 = dma.vmem_to_hbm [thread:$0]  %s323, 256, %s320, %s306
        $region40: #{tpu_custom_call.1} parent=31 // pred_fallthru
          _
      $region32: #{tpu_custom_call.1} parent=5 // pred_fallthru
        _
      %p326 = scmp.le.s32.totalorder 2, %s15
      // Predicated region
      $region41: #{tpu_custom_call.1} parent=5 // pred_check
        %p327 = pneg %p326
      $region42: #{tpu_custom_call.1} parent=5 // pred_check_branch
        %329 = sbr.rel (%p327) target = $region44
      $region43: #{tpu_custom_call.1} parent=5 // pred_region
        %s330 = ssub.s32 %s15, 2
        // Predicated region
        $region45: #{tpu_custom_call.1} parent=43 // pred_check
          %p331 = pneg %p128
        $region46: #{tpu_custom_call.1} parent=43 // pred_check_branch
          %333 = sbr.rel (%p331) target = $region48
        $region47: #{tpu_custom_call.1} parent=43 // pred_region
          %s334 = sand.u32 %s113, 1
          %s335 = scalar_lea.sflag [#allocation4], %s334
          %s336 = sand.u32 %s113, 1
          %s337 = smul.addr %s336, 16
          %s338 = scalar_lea.vmem [#allocation5], %s337
          %339 = dma.done %s335, 256
        $region48: #{tpu_custom_call.1} parent=43 // pred_fallthru
          _
      $region44: #{tpu_custom_call.1} parent=5 // pred_fallthru
        _
    $region6: #{tpu_custom_call.1} parent=1 // loop_footer
      %s19 = sadd.s32 1, %s15
    $region7: #{tpu_custom_call.1} parent=1 // loop_footer_branch
      %14 = sbr.rel target = $region3
    $region8: #{tpu_custom_call.1} parent=1 // loop_exit
      _
    %340 = vsyncpa [#allocation3], 1
    %s341 = scalar_lea.sflag [#allocation3], 1
    %342 = vsyncpa %s341, 1
    %343 = vsyncpa [#allocation4], 1
    %s344 = scalar_lea.sflag [#allocation4], 1
    %345 = vsyncpa %s344, 1

</llo_original>
